<compile_context>
chip_gen: v7x
topology: tpu7x:2x2x1
jax: 0.10.0
libtpu: 0.0.40
codegen_flags: <defaults>
</compile_context>

<pallas_src>
import functools

import jax
import jax.numpy as jnp
from jax.experimental import pallas as pl
from jax.experimental.pallas import tpu as pltpu


def _cluster_lookup_kernel(x_ref, cl_ref, probs_ref, loss_ref, *, alpha,
                           log_probs):
    """One grid step processes one (batch, pixel-tile) slab.

    x_ref:     (1, C, T)      raw features, channel on sublanes, pixels on lanes
    cl_ref:    (N, C)         L2-normalized cluster centers (same every step)
    probs_ref: (1, N, T)      cluster (log-)probabilities (output, lane-dense)
    loss_ref:  (1, 1, 1, 1)   per-tile partial sum of probs * inner_products
    """
    x = x_ref[0].astype(jnp.float32)                       # (C, T)

    # F.normalize(x, dim=1): x / max(||x||_2, 1e-12); channel axis is axis 0.
    # rsqrt(max(sum_sq, 1e-24)) == 1 / max(||x||, 1e-12)  (sqrt is monotone);
    # rsqrt + multiply uses the EUP slot instead of a VALU divide.
    sum_sq = jnp.sum(x * x, axis=0, keepdims=True)         # (1, T)
    inv_norm = jax.lax.rsqrt(jnp.maximum(sum_sq, 1e-24))
    xn = x * inv_norm                                      # (C, T)

    cl = cl_ref[...].astype(jnp.float32)                   # (N, C)

    # inner_products: einsum('bchw,nc->bnhw')  ==  (N, C) @ (C, T) -> (N, T)
    # (cluster table is already in the right orientation: no per-step transpose)
    ip = jnp.dot(cl, xn, preferred_element_type=jnp.float32)

    if alpha is None:
        # one_hot(argmax(ip, dim=clusters)); first-index tie-break like torch.
        n = ip.shape[0]
        iota = jax.lax.broadcasted_iota(jnp.int32, ip.shape, 0)   # (N, T)
        maxv = jnp.max(ip, axis=0, keepdims=True)                 # (1, T)
        idx = jnp.min(jnp.where(ip >= maxv, iota, n), axis=0,
                      keepdims=True)                              # (1, T)
        probs = (iota == idx).astype(jnp.float32)                 # (N, T)
        probs_ref[0] = probs                                      # full-width lane store
    else:
        # softmax(inner_products * alpha) over the cluster axis (axis 0 here).
        z = ip * alpha
        zmax = jnp.max(z, axis=0, keepdims=True)                  # (1, T)
        e = jnp.exp(z - zmax)
        denom = jnp.sum(e, axis=0, keepdims=True)                 # (1, T)
        probs = e * pl.reciprocal(denom, approx=False)            # (N, T)
        if log_probs:
            # log_softmax(z) = (z - zmax) - log(sum exp(z - zmax))
            probs_ref[0] = (z - zmax) - jnp.log(denom)
        else:
            probs_ref[0] = probs

    # Per-tile partial of sum over pixels & clusters of probs * inner_products
    # (loss is always computed from `probs`, matching the PyTorch module even
    #  when log_probs are the returned tensor).
    part = jnp.sum(probs * ip, axis=1, keepdims=True)      # (N, 1)  lane reduce
    total = jnp.sum(part, axis=0, keepdims=True)           # (1, 1)  sublane reduce
    loss_ref[...] = total.reshape(1, 1, 1, 1)


def _pick_tile_hw(hw, cap=8192):
    """Largest pixel tile: whole H*W if it fits, else a /128 divisor <= cap."""
    if hw <= cap:
        return hw
    for t in range(cap - (cap % 128), 127, -128):
        if hw % t == 0:
            return t
    return hw  # full-extent block is always a legal BlockSpec


def cluster_lookup(x, clusters, alpha=2.0, log_probs=False, *, tile_hw=None):
    """x: (B, C, H, W) float32, clusters: (N, C) float32.

    Returns (cluster_loss scalar, cluster_probs (B, N, H, W)) where the probs
    tensor is softmax probs, one-hot probs (alpha=None), or log-softmax
    (log_probs=True), matching the PyTorch ClusterLookup.forward."""
    if log_probs and alpha is None:
        raise ValueError("log_probs=True requires alpha (matches PyTorch).")

    B, C, H, W = x.shape
    N = clusters.shape[0]
    HW = H * W
    P = B * HW

    if tile_hw is None:
        tile_hw = _pick_tile_hw(HW)
    assert HW % tile_hw == 0, "tile_hw must divide H*W"
    n_t = HW // tile_hw

    # Free reshape (no data movement): NCHW -> (B, C, H*W).
    x_flat = x.reshape(B, C, HW)

    # Normalize the (tiny) cluster table once, outside the grid loop; keep it
    # as (N, C) so the in-kernel matmul needs no transpose.
    cl_sum_sq = jnp.sum(clusters * clusters, axis=1, keepdims=True)
    cl_norm = clusters * jax.lax.rsqrt(jnp.maximum(cl_sum_sq, 1e-24))

    kernel = functools.partial(
        _cluster_lookup_kernel,
        alpha=None if alpha is None else float(alpha),
        log_probs=bool(log_probs))

    # Blocks are ~C*tile_hw*4 + N*tile_hw*4 bytes (a few MiB at tile_hw=8192,
    # C=32, N=16), well inside the default scoped-VMEM limit on all
    # generations; set vmem_limit_bytes in CompilerParams if C/N grow.
    probs_flat, loss_parts = pl.pallas_call(
        kernel,
        out_shape=(
            jax.ShapeDtypeStruct((B, N, HW), jnp.float32),
            jax.ShapeDtypeStruct((B, n_t, 1, 1), jnp.float32),
        ),
        grid_spec=pltpu.PrefetchScalarGridSpec(
            num_scalar_prefetch=0,
            grid=(B, n_t),
            in_specs=[
                pl.BlockSpec((1, C, tile_hw), lambda b, t: (b, 0, t)),
                pl.BlockSpec((N, C), lambda b, t: (0, 0)),
            ],
            out_specs=[
                pl.BlockSpec((1, N, tile_hw), lambda b, t: (b, 0, t)),
                pl.BlockSpec((1, 1, 1, 1), lambda b, t: (b, t, 0, 0)),
            ],
        ),
        compiler_params=pltpu.CompilerParams(
            dimension_semantics=("parallel", "parallel")),
    )(x_flat, cl_norm)

    # Free reshape back to the PyTorch (B, N, H, W) convention.
    probs = probs_flat.reshape(B, N, H, W)
    # cluster_loss = -sum(probs * ip, dim=1).mean()  (mean over B, H, W)
    loss = -jnp.sum(loss_parts) / P
    return loss, probs


def _reference(x, clusters, alpha=2.0, log_probs=False):
    cl_n = clusters / jnp.maximum(
        jnp.sqrt(jnp.sum(clusters * clusters, axis=1, keepdims=True)), 1e-12)
    x_n = x / jnp.maximum(
        jnp.sqrt(jnp.sum(x * x, axis=1, keepdims=True)), 1e-12)
    ip = jnp.einsum('bchw,nc->bnhw', x_n, cl_n)
    if alpha is None:
        idx = jnp.argmax(ip, axis=1)
        probs = jax.nn.one_hot(idx, clusters.shape[0], axis=1,
                               dtype=jnp.float32)
    else:
        probs = jax.nn.softmax(ip * alpha, axis=1)
    loss = -jnp.sum(probs * ip, axis=1).mean()
    if log_probs:
        return loss, jax.nn.log_softmax(ip * alpha, axis=1)
    return loss, probs


if __name__ == "__main__":
    # Small, deterministic shapes: dim=32, n_classes=16, x = (2, 32, 16, 16).
    B, C, H, W, N = 2, 32, 16, 16, 16
    key = jax.random.PRNGKey(0)
    kx, kc = jax.random.split(key)
    x = jax.random.normal(kx, (B, C, H, W), dtype=jnp.float32)
    clusters = jax.random.normal(kc, (N, C), dtype=jnp.float32)  # torch.randn init

    # 1) default path: alpha=2.0, softmax probs
    loss, probs = cluster_lookup(x, clusters, alpha=2.0)
    jax.block_until_ready((loss, probs))
    loss_ref, probs_ref = _reference(x, clusters, alpha=2.0)
    assert probs.shape == (B, N, H, W)
    assert jnp.allclose(loss, loss_ref, atol=1e-5), (loss, loss_ref)
    assert jnp.allclose(probs, probs_ref, atol=1e-5)

    # 2) log_probs path: returns (loss from softmax probs, log_softmax)
    loss_l, logp = cluster_lookup(x, clusters, alpha=2.0, log_probs=True)
    jax.block_until_ready((loss_l, logp))
    loss_l_ref, logp_ref = _reference(x, clusters, alpha=2.0, log_probs=True)
    assert jnp.allclose(loss_l, loss_l_ref, atol=1e-4), (loss_l, loss_l_ref)
    assert jnp.allclose(logp, logp_ref, atol=1e-4)

    # 3) alpha=None path: one-hot argmax probs.  Near-ties in the inner
    # products may legitimately flip an argmax between the MXU matmul and the
    # XLA reference, so compare the loss tightly and the probs in aggregate.
    loss_o, probs_o = cluster_lookup(x, clusters, alpha=None)
    jax.block_until_ready((loss_o, probs_o))
    loss_o_ref, probs_o_ref = _reference(x, clusters, alpha=None)
    assert jnp.allclose(loss_o, loss_o_ref, atol=1e-4), (loss_o, loss_o_ref)
    assert jnp.mean(jnp.abs(probs_o - probs_o_ref)) < 1e-3
    assert jnp.allclose(jnp.sum(probs_o, axis=1), 1.0, atol=1e-6)

    print("KERNEL_OK")
</pallas_src>

<mosaic_0001>
module attributes {stable_mosaic.version = 11 : i64} {
  func.func @_cluster_lookup_kernel(%arg0: i32, %arg1: i32, %arg2: memref<1x32x256xf32, #tpu.memory_space<vmem>>, %arg3: memref<16x32xf32, #tpu.memory_space<vmem>>, %arg4: memref<1x16x256xf32, #tpu.memory_space<vmem>>, %arg5: memref<1x1x1x1xf32, #tpu.memory_space<vmem>>) attributes {dimension_semantics = [#tpu.dimension_semantics<parallel>, #tpu.dimension_semantics<parallel>], iteration_bounds = array<i64: 2, 1>, scalar_prefetch = 0 : i64, scratch_operands = 0 : i64, tpu.core_type = #tpu.core_type<tc>, window_params = [{transform_indices = @transform_0, window_bounds = array<i64: 1, 32, 256>}, {pipeline_mode = #tpu.pipeline_mode<synchronous>, transform_indices = @transform_1, window_bounds = array<i64: 16, 32>}, {transform_indices = @transform_2, window_bounds = array<i64: 1, 16, 256>}, {transform_indices = @transform_3, window_bounds = array<i64: 1, 1, 1, 1>}]} {
    %c0 = arith.constant 0 : index
    %c0_0 = arith.constant 0 : index
    %c0_1 = arith.constant 0 : index
    %0 = vector.load %arg2[%c0, %c0_0, %c0_1] : memref<1x32x256xf32, #tpu.memory_space<vmem>>, vector<1x32x256xf32>
    %1 = vector.shape_cast %0 : vector<1x32x256xf32> to vector<32x256xf32>
    %2 = arith.mulf %1, %1 : vector<32x256xf32>
    %cst = arith.constant dense<0.000000e+00> : vector<256xf32>
    %3 = vector.multi_reduction <add>, %2, %cst [0] : vector<32x256xf32> to vector<256xf32>
    %4 = vector.shape_cast %3 : vector<256xf32> to vector<1x256xf32>
    %cst_2 = arith.constant 1.000000e-24 : f32
    %5 = vector.broadcast %cst_2 : f32 to vector<1x256xf32>
    %6 = arith.maximumf %4, %5 : vector<1x256xf32>
    %7 = math.rsqrt %6 : vector<1x256xf32>
    %8 = vector.broadcast %7 : vector<1x256xf32> to vector<32x256xf32>
    %9 = arith.mulf %1, %8 : vector<32x256xf32>
    %c0_3 = arith.constant 0 : index
    %c0_4 = arith.constant 0 : index
    %10 = vector.load %arg3[%c0_3, %c0_4] : memref<16x32xf32, #tpu.memory_space<vmem>>, vector<16x32xf32>
    %cst_5 = arith.constant dense<0.000000e+00> : vector<16x256xf32>
    %11 = tpu.matmul %10, %9, %cst_5 {dimension_numbers = #tpu.dot_dimension_numbers<[1], [0], [0], [1], [0, 0, 1, 1], [], []>} : vector<16x32xf32>, vector<32x256xf32>, vector<16x256xf32> -> vector<16x256xf32>
    %cst_6 = arith.constant 2.000000e+00 : f32
    %12 = vector.broadcast %cst_6 : f32 to vector<16x256xf32>
    %13 = arith.mulf %11, %12 : vector<16x256xf32>
    %cst_7 = arith.constant dense<0xFF800000> : vector<256xf32>
    %14 = vector.multi_reduction <maximumf>, %13, %cst_7 [0] : vector<16x256xf32> to vector<256xf32>
    %15 = vector.shape_cast %14 : vector<256xf32> to vector<1x256xf32>
    %16 = vector.broadcast %15 : vector<1x256xf32> to vector<16x256xf32>
    %17 = arith.subf %13, %16 : vector<16x256xf32>
    %18 = math.exp %17 : vector<16x256xf32>
    %cst_8 = arith.constant dense<0.000000e+00> : vector<256xf32>
    %19 = vector.multi_reduction <add>, %18, %cst_8 [0] : vector<16x256xf32> to vector<256xf32>
    %20 = vector.shape_cast %19 : vector<256xf32> to vector<1x256xf32>
    %21 = tpu.reciprocal %20 : vector<1x256xf32> -> vector<1x256xf32>
    %22 = vector.broadcast %21 : vector<1x256xf32> to vector<16x256xf32>
    %23 = arith.mulf %18, %22 : vector<16x256xf32>
    %c0_9 = arith.constant 0 : index
    %c0_10 = arith.constant 0 : index
    %c0_11 = arith.constant 0 : index
    %24 = vector.load %arg4[%c0_9, %c0_10, %c0_11] : memref<1x16x256xf32, #tpu.memory_space<vmem>>, vector<1x16x256xf32>
    %25 = vector.shape_cast %24 : vector<1x16x256xf32> to vector<16x256xf32>
    %26 = vector.shape_cast %23 : vector<16x256xf32> to vector<1x16x256xf32>
    tpu.vector_store %arg4[%c0_9, %c0_10, %c0_11], %26 {strides = array<i32>} : memref<1x16x256xf32, #tpu.memory_space<vmem>>, vector<1x16x256xf32>,
    %27 = arith.mulf %23, %11 : vector<16x256xf32>
    %cst_12 = arith.constant dense<0.000000e+00> : vector<16xf32>
    %28 = vector.multi_reduction <add>, %27, %cst_12 [1] : vector<16x256xf32> to vector<16xf32>
    %29 = vector.shape_cast %28 : vector<16xf32> to vector<16x1xf32>
    %cst_13 = arith.constant dense<0.000000e+00> : vector<1xf32>
    %30 = vector.multi_reduction <add>, %29, %cst_13 [0] : vector<16x1xf32> to vector<1xf32>
    %31 = vector.shape_cast %30 : vector<1xf32> to vector<1x1xf32>
    %32 = vector.shape_cast %31 : vector<1x1xf32> to vector<1x1x1x1xf32>
    %c0_14 = arith.constant 0 : index
    %c0_15 = arith.constant 0 : index
    %c0_16 = arith.constant 0 : index
    %c0_17 = arith.constant 0 : index
    %33 = vector.load %arg5[%c0_14, %c0_15, %c0_16, %c0_17] : memref<1x1x1x1xf32, #tpu.memory_space<vmem>>, vector<1x1x1x1xf32>
    tpu.vector_store %arg5[%c0_14, %c0_15, %c0_16, %c0_17], %32 {strides = array<i32>} : memref<1x1x1x1xf32, #tpu.memory_space<vmem>>, vector<1x1x1x1xf32>,
    return
  }
  func.func @transform_0(%arg0: i32, %arg1: i32) -> (i32, i32, i32) {
    %c0_i32 = arith.constant 0 : i32
    %c0_i32_0 = arith.constant 0 : i32
    return %arg0, %c0_i32, %arg1 : i32, i32, i32
  }
  func.func @transform_1(%arg0: i32, %arg1: i32) -> (i32, i32) {
    %c0_i32 = arith.constant 0 : i32
    %c0_i32_0 = arith.constant 0 : i32
    %c0_i32_1 = arith.constant 0 : i32
    return %c0_i32, %c0_i32_0 : i32, i32
  }
  func.func @transform_2(%arg0: i32, %arg1: i32) -> (i32, i32, i32) {
    %c0_i32 = arith.constant 0 : i32
    %c0_i32_0 = arith.constant 0 : i32
    return %arg0, %c0_i32, %arg1 : i32, i32, i32
  }
  func.func @transform_3(%arg0: i32, %arg1: i32) -> (i32, i32, i32, i32) {
    %c0_i32 = arith.constant 0 : i32
    %c0_i32_0 = arith.constant 0 : i32
    %c0_i32_1 = arith.constant 0 : i32
    return %arg0, %arg1, %c0_i32, %c0_i32_0 : i32, i32, i32, i32
  }
}

</mosaic_0001>

<llo_original>
// kernel: tpu_custom_call.1
$region0: #{tpu_custom_call.1}
  #allocation0 [shape = 'u32[]', space=smem, size = 0x4, offset = 0x4, fixed_abs, tag = 'smem constant byte address 0x4 - core index']
  #allocation1 [shape = 'u32[144,128]{1,0:T(1,128)}', space=vmem, size = 0x12000, scoped, tag = 'internal scratch']
  %s0 = inlined_call_operand.hbm [shape: f32[2,32,256], index: 0, kind: input, shape index: {}]
  %s1 = inlined_call_operand.hbm [shape: f32[16,32], index: 1, kind: input, shape index: {}]
  %s2 = inlined_call_operand.hbm [shape: f32[2,16,256], index: 2, kind: output, shape index: {0}]
  %s3 = inlined_call_operand.vmem [shape: f32[2,1,1,1], index: 3, kind: output, shape index: {1}]
  %4 = xla_tuple %s2, %s3
  %s5 = sld [smem:[#allocation0]]
  $region57: #{tpu_custom_call.1} parent=0
    _
  %s7 = ssub.s32 1, %s5
  %s8 = scalar_select 0, %s7, %s5
  $region1: #{tpu_custom_call.1} parent=0
    #allocation2 [shape = 'u8[65536]{0}', space=vmem, size = 0x10000, scoped, tag = 'input window, operand 0']
    #allocation3 [shape = 's32[2]{0}', space=sflag, size = 0x8, scoped, tag = 'scoped memory for tpu_custom_call.1']
    #allocation4 [shape = 's32[2]{0}', space=sflag, size = 0x8, scoped, tag = 'scoped memory for tpu_custom_call.1']
    #allocation5 [shape = 'u8[8192]{0}', space=vmem, size = 0x2000, scoped, tag = 'input window, operand 1, single buffered']
    #allocation6 [shape = 's32[1]{0}', space=sflag, size = 0x4, scoped, tag = 'scoped memory for tpu_custom_call.1']
    #allocation7 [shape = 'u8[32768]{0}', space=vmem, size = 0x8000, scoped, tag = 'output window, operand 0']
    %9 = vsyncpa [#allocation3], 0
    %s10 = scalar_lea.sflag [#allocation3], 1
    %11 = vsyncpa %s10, 0
    %12 = vsyncpa [#allocation6], 0
    %13 = vsyncpa [#allocation4], 0
    %s14 = scalar_lea.sflag [#allocation4], 1
    %15 = vsyncpa %s14, 0
    loop: start=0, step=1, limit=4
    $region2: #{tpu_custom_call.1} parent=1 // loop_pre_header
      _
    $region3: #{tpu_custom_call.1} parent=1 // loop_header
      %s17 = sphi 0, %s21
      %p18 = scmp.ge.s32.totalorder %s17, 4
      %s24 = sphi 0, %s36
      %s25 = sphi 0, %s32
      %s26 = sphi 0, %s24
      %s27 = sphi 0, %s25
      %s28 = sphi 0, %s26
      %s29 = sphi 0, %s27
      %s41 = sphi 0, %s43
      %s44 = sphi 0, %s41
      %s45 = sphi 0, %s44
      %s61 = sphi 0, %s45
      %s65 = sphi 0, %s65
      %s67 = sphi 0, %s65
      %s68 = sphi 0, %s67
      %s82 = sphi 0, %s68
      %s90 = sphi 0, %s92
      %s93 = sphi 0, %s90
      %s94 = sphi 0, %s93
      %s110 = sphi 0, %s94
      %s118 = sphi 0, %s120
      %s121 = sphi 0, %s118
      %s122 = sphi 0, %s121
      %s138 = sphi 0, %s122
    $region4: #{tpu_custom_call.1} parent=1 // loop_header_branch
      %20 = sbr.rel (%p18) target = $region8
    $region5: #{tpu_custom_call.1} parent=1 // loop_body
      %s22 = ssub.s32 %s17, 1
      %s23 = ssub.s32 %s17, 2
      %s30 = sadd.s32 1, %s25
      %p31 = scmp.ge.s32.totalorder %s30, 1
      %s32 = scalar_select %p31, 0, %s30
      %s33 = sadd.s32 1, %s24
      %s34 = scalar_select %p31, %s33, %s24
      %p35 = scmp.ge.s32.totalorder %s34, 2
      %s36 = scalar_select %p35, 0, %s34
      %s37 = ssub.s32 %s24, %s36
      %s38 = ssub.s32 %s25, %s32
      %s39 = sor.u32 %s37, %s38
      %p40 = scmp.eq.s32.totalorder %s39, 0
      %s42 = sadd.s32 %s41, 1
      %s43 = scalar_select %p40, %s41, %s42
      %p46 = pneg %p40
      %p47 = scmp.eq.s32.totalorder %s17, 1
      %p48 = por %p46, %p47
      %p49 = scmp.ne.s32.totalorder %s41, %s44
      %p50 = scmp.eq.s32.totalorder %s17, 0
      %p51 = por %p49, %p50
      %p52 = scmp.ne.s32.totalorder %s41, %s44
      %p53 = scmp.eq.s32.totalorder %s22, 1
      %p54 = por %p52, %p53
      %p55 = scmp.ne.s32.totalorder %s44, %s45
      %p56 = scmp.eq.s32.totalorder %s22, 0
      %p57 = por %p55, %p56
      %p58 = scmp.ne.s32.totalorder %s44, %s45
      %p59 = scmp.eq.s32.totalorder %s23, 1
      %p60 = por %p58, %p59
      %p62 = scmp.ne.s32.totalorder %s45, %s61
      %p63 = scmp.eq.s32.totalorder %s23, 0
      %p64 = por %p62, %p63
      %s66 = sadd.s32 %s65, 1
      %p69 = scmp.eq.s32.totalorder %s17, 1
      %p70 = scmp.ne.s32.totalorder %s65, %s67
      %p71 = scmp.eq.s32.totalorder %s17, 0
      %p72 = por %p70, %p71
      %p73 = scmp.ne.s32.totalorder %s65, %s67
      %p74 = scmp.eq.s32.totalorder %s22, 1
      %p75 = por %p73, %p74
      %p76 = scmp.ne.s32.totalorder %s67, %s68
      %p77 = scmp.eq.s32.totalorder %s22, 0
      %p78 = por %p76, %p77
      %p79 = scmp.ne.s32.totalorder %s67, %s68
      %p80 = scmp.eq.s32.totalorder %s23, 1
      %p81 = por %p79, %p80
      %p83 = scmp.ne.s32.totalorder %s68, %s82
      %p84 = scmp.eq.s32.totalorder %s23, 0
      %p85 = por %p83, %p84
      %s86 = ssub.s32 %s24, %s36
      %s87 = ssub.s32 %s25, %s32
      %s88 = sor.u32 %s86, %s87
      %p89 = scmp.eq.s32.totalorder %s88, 0
      %s91 = sadd.s32 %s90, 1
      %s92 = scalar_select %p89, %s90, %s91
      %p95 = pneg %p89
      %p96 = scmp.eq.s32.totalorder %s17, 1
      %p97 = por %p95, %p96
      %p98 = scmp.ne.s32.totalorder %s90, %s93
      %p99 = scmp.eq.s32.totalorder %s17, 0
      %p100 = por %p98, %p99
      %p101 = scmp.ne.s32.totalorder %s90, %s93
      %p102 = scmp.eq.s32.totalorder %s22, 1
      %p103 = por %p101, %p102
      %p104 = scmp.ne.s32.totalorder %s93, %s94
      %p105 = scmp.eq.s32.totalorder %s22, 0
      %p106 = por %p104, %p105
      %p107 = scmp.ne.s32.totalorder %s93, %s94
      %p108 = scmp.eq.s32.totalorder %s23, 1
      %p109 = por %p107, %p108
      %p111 = scmp.ne.s32.totalorder %s94, %s110
      %p112 = scmp.eq.s32.totalorder %s23, 0
      %p113 = por %p111, %p112
      %s114 = ssub.s32 %s24, %s36
      %s115 = ssub.s32 %s25, %s32
      %s116 = sor.u32 %s114, %s115
      %p117 = scmp.eq.s32.totalorder %s116, 0
      %s119 = sadd.s32 %s118, 1
      %s120 = scalar_select %p117, %s118, %s119
      %p123 = pneg %p117
      %p124 = scmp.eq.s32.totalorder %s17, 1
      %p125 = por %p123, %p124
      %p126 = scmp.ne.s32.totalorder %s118, %s121
      %p127 = scmp.eq.s32.totalorder %s17, 0
      %p128 = por %p126, %p127
      %p129 = scmp.ne.s32.totalorder %s118, %s121
      %p130 = scmp.eq.s32.totalorder %s22, 1
      %p131 = por %p129, %p130
      %p132 = scmp.ne.s32.totalorder %s121, %s122
      %p133 = scmp.eq.s32.totalorder %s22, 0
      %p134 = por %p132, %p133
      %p135 = scmp.ne.s32.totalorder %s121, %s122
      %p136 = scmp.eq.s32.totalorder %s23, 1
      %p137 = por %p135, %p136
      %p139 = scmp.ne.s32.totalorder %s122, %s138
      %p140 = scmp.eq.s32.totalorder %s23, 0
      %p141 = por %p139, %p140
      %p142 = scmp.le.s32.totalorder 1, %s17
      %p143 = scmp.lt.s32.totalorder %s17, 3
      %p144 = pnand %p142, %p143
      %p145 = pneg %p144
      // Predicated region
      $region9: #{tpu_custom_call.1} parent=5 // pred_check
        _
      $region10: #{tpu_custom_call.1} parent=5 // pred_check_branch
        %147 = sbr.rel (%p144) target = $region12
      $region11: #{tpu_custom_call.1} parent=5 // pred_region
        %s148 = ssub.s32 %s17, 1
        // Predicated region
        $region13: #{tpu_custom_call.1} parent=11 // pred_check
          %p149 = pneg %p78
        $region14: #{tpu_custom_call.1} parent=11 // pred_check_branch
          %151 = sbr.rel (%p149) target = $region16
        $region15: #{tpu_custom_call.1} parent=11 // pred_region
          %s153 = ssub.s32 256, 256
          %154 = vsyncadd [#allocation6], %s153
          %s155 = sshll.u32 [#allocation5], 4
          %s156 = int_to_ptr.vmem [resolvable:$true] %s155
          %161 = dma.hbm_to_vmem [thread:$0]  %s1, 256, %s156, [#allocation6], 128, 128, 8
        $region16: #{tpu_custom_call.1} parent=11 // pred_fallthru
          _
      $region12: #{tpu_custom_call.1} parent=5 // pred_fallthru
        _
      %p162 = scmp.lt.s32.totalorder %s17, 2
      // Predicated region
      $region17: #{tpu_custom_call.1} parent=5 // pred_check
        %p163 = pneg %p162
      $region18: #{tpu_custom_call.1} parent=5 // pred_check_branch
        %165 = sbr.rel (%p163) target = $region20
      $region19: #{tpu_custom_call.1} parent=5 // pred_region
        // Predicated region
        $region21: #{tpu_custom_call.1} parent=19 // pred_check
          %p166 = pneg %p51
        $region22: #{tpu_custom_call.1} parent=19 // pred_check_branch
          %168 = sbr.rel (%p166) target = $region24
        $region23: #{tpu_custom_call.1} parent=19 // pred_region
          %s169 = sand.u32 %s41, 1
          %s170 = scalar_lea.sflag [#allocation3], %s169
          %s171 = sand.u32 %s41, 1
          %s172 = smul.addr %s171, 64
          %s173 = scalar_lea.vmem [#allocation2], %s172
          %s174 = smul.u32 2, %s25
          %s176 = ssub.s32 1024, 1024
          %177 = vsyncadd %s170, %s176
          %s178 = smul.addr %s24, 8
          %s179 = sadd.s32 %s174, %s178
          %s180 = smul.addr %s179, 128
          %s181 = scalar_lea.hbm %s0, %s180
          %s182 = sshll.u32 %s173, 4
          %s183 = int_to_ptr.vmem [resolvable:$true] %s182
          %188 = dma.hbm_to_vmem [thread:$0]  %s181, 1024, %s183, %s170, 256, 256, 16
        $region24: #{tpu_custom_call.1} parent=19 // pred_fallthru
          _
      $region20: #{tpu_custom_call.1} parent=5 // pred_fallthru
        _
      %p189 = scmp.le.s32.totalorder 1, %s17
      %p190 = scmp.lt.s32.totalorder %s17, 3
      %p191 = pnand %p189, %p190
      %p192 = pneg %p191
      // Predicated region
      $region25: #{tpu_custom_call.1} parent=5 // pred_check
        _
      $region26: #{tpu_custom_call.1} parent=5 // pred_check_branch
        %194 = sbr.rel (%p191) target = $region28
      $region27: #{tpu_custom_call.1} parent=5 // pred_region
        %s195 = ssub.s32 %s17, 1
        %s196 = sand.u32 %s44, 1
        %s197 = scalar_lea.sflag [#allocation3], %s196
        %s198 = sand.u32 %s44, 1
        %s199 = smul.addr %s198, 64
        %s200 = scalar_lea.vmem [#allocation2], %s199
        // Predicated region
        $region29: #{tpu_custom_call.1} parent=27 // pred_check
          %p201 = pneg %p57
        $region30: #{tpu_custom_call.1} parent=27 // pred_check_branch
          %203 = sbr.rel (%p201) target = $region32
        $region31: #{tpu_custom_call.1} parent=27 // pred_region
          %204 = dma.done %s197, 1024
        $region32: #{tpu_custom_call.1} parent=27 // pred_fallthru
          _
        // Predicated region
        $region33: #{tpu_custom_call.1} parent=27 // pred_check
          %p205 = pneg %p78
        $region34: #{tpu_custom_call.1} parent=27 // pred_check_branch
          %207 = sbr.rel (%p205) target = $region36
        $region35: #{tpu_custom_call.1} parent=27 // pred_region
          %208 = dma.done [#allocation6], 256
        $region36: #{tpu_custom_call.1} parent=27 // pred_fallthru
          _
        %s209 = sand.u32 %s44, 1
        %s210 = scalar_lea.sflag [#allocation3], %s209
        %s211 = sand.u32 %s44, 1
        %s212 = smul.addr %s211, 64
        %s213 = scalar_lea.vmem [#allocation2], %s212
        %p214 = pneg %p57
        %p215 = pneg %p54
        %p216 = pneg %p78
        %p217 = pneg %p75
        %p218 = pneg %p106
        %p219 = pneg %p103
        %s220 = sand.u32 %s93, 1
        %s221 = scalar_lea.sflag [#allocation4], %s220
        %s222 = sand.u32 %s93, 1
        %s223 = smul.addr %s222, 32
        %s224 = scalar_lea.vmem [#allocation7], %s223
        %p225 = pneg %p134
        %p226 = pneg %p131
        %p227 = scmp.lt.s32.totalorder %s26, 1
        %s228 = scalar_select %p227, %s26, 1
        %p229 = scmp.lt.s32.totalorder %s27, 0
        %s230 = scalar_select %p229, %s27, 0
        %s231 = sadd.s32 %s230, %s228
        %s232 = scalar_lea.vmem %s3, %s231
        %s233 = smul.u32 2, %s27
        %s234 = smul.u32 2, %s27
        %p235 = scmp.lt.s32.totalorder %s26, 1
        %s236 = scalar_select %p235, %s26, 1
        %p237 = scmp.lt.s32.totalorder %s27, 0
        %s238 = scalar_select %p237, %s27, 0
        %s239 = sadd.s32 %s238, %s236
        %s240 = scalar_lea.vmem %s3, %s239
        %v241 = vld [vmem:[%s200] sm:$0xff]
        %v242 = vld [vmem:[%s200 + $0x8] sm:$0xff]
        %v243 = vld [vmem:[%s200 + $0x10] sm:$0xff]
        %v244 = vld [vmem:[%s200 + $0x18] sm:$0xff]
        %v245 = vld [vmem:[%s200 + $0x20] sm:$0xff]
        %v246 = vld [vmem:[%s200 + $0x28] sm:$0xff]
        %v247 = vld [vmem:[%s200 + $0x30] sm:$0xff]
        %v248 = vld [vmem:[%s200 + $0x38] sm:$0xff]
        %v249 = vmul.f32 %v241, %v241
        %v250 = vmul.f32 %v242, %v242
        %v251 = vmul.f32 %v243, %v243
        %v252 = vmul.f32 %v244, %v244
        %v253 = vmul.f32 %v245, %v245
        %v254 = vmul.f32 %v246, %v246
        %v255 = vmul.f32 %v247, %v247
        %v256 = vmul.f32 %v248, %v248
        %v257 = vadd.f32 %v249, %v251
        %v258 = vadd.f32 %v257, %v253
        %v259 = vadd.f32 %v258, %v255
        %v260 = vrot.slane %v259, 4
        %v261 = vadd.f32 %v259, %v260
        %v262 = vrot.slane %v261, 2
        %v263 = vadd.f32 %v261, %v262
        %v264 = vrot.slane %v263, 1
        %v265 = vadd.f32 %v263, %v264
        %v266 = vadd.f32 %v250, %v252
        %v267 = vadd.f32 %v266, %v254
        %v268 = vadd.f32 %v267, %v256
        %v269 = vrot.slane %v268, 4
        %v270 = vadd.f32 %v268, %v269
        %v271 = vrot.slane %v270, 2
        %v272 = vadd.f32 %v270, %v271
        %v273 = vrot.slane %v272, 1
        %v274 = vadd.f32 %v272, %v273
        %v275 = vmax.f32 %v265, 1e-24
        %v276 = vmax.f32 %v274, 1e-24
        %v277 = vrsqrt.pop %v275
        %v278 = vrsqrt.pop %v276
        %v279 = vmul.f32 %v241, %v277
        %v280 = vmul.f32 %v242, %v278
        %v281 = vmul.f32 %v243, %v277
        %v282 = vmul.f32 %v244, %v278
        %v283 = vmul.f32 %v245, %v277
        %v284 = vmul.f32 %v246, %v278
        %v285 = vmul.f32 %v247, %v277
        %v286 = vmul.f32 %v248, %v278
        %v287 = vld [vmem:[#allocation5] sm:$0xff]
        %v288 = vld [vmem:[#allocation5 + $0x8] sm:$0xff]
        %vm289 = vcmask 261120
        %v291 = vsel %vm289, %v287, 0
        %v294 = vsel %vm289, %v288, 0
        %296 = vmatprep.subr.mxu0 %v280
        %297 = vmatpush1.msra.mxu0 %v279
        %298 = vmatprep.subr.mxu0 %v282
        %299 = vmatpush1.msra.mxu0 %v281
        %300 = vmatprep.subr.mxu0 %v284
        %301 = vmatpush1.msra.mxu0 %v283
        %302 = vmatprep.subr.mxu0 %v286
        %303 = vmatpush1.msra.mxu0 %v285
        %304 = vmatprep.subr.mxu0 0.0
        %305 = vmatpush1.msra.mxu0 0.0
        %306 = vmatprep.subr.mxu0 0.0
        %307 = vmatpush1.msra.mxu0 0.0
        %308 = vmatprep.subr.mxu0 0.0
        %309 = vmatpush1.msra.mxu0 0.0
        %310 = vmatprep.subr.mxu0 0.0
        %311 = vmatpush1.msra.mxu0 0.0
        %312 = vmatprep.subr.mxu0 0.0
        %313 = vmatpush1.msra.mxu0 0.0
        %314 = vmatprep.subr.mxu0 0.0
        %315 = vmatpush1.msra.mxu0 0.0
        %316 = vmatprep.subr.mxu0 0.0
        %317 = vmatpush1.msra.mxu0 0.0
        %318 = vmatprep.subr.mxu0 0.0
        %319 = vmatpush1.msra.mxu0 0.0
        %320 = vmatprep.subr.mxu0 0.0
        %321 = vmatpush1.msra.mxu0 0.0
        %322 = vmatprep.subr.mxu0 0.0
        %323 = vmatpush1.msra.mxu0 0.0
        %324 = vmatprep.subr.mxu0 0.0
        %325 = vmatpush1.msra.mxu0 0.0
        %326 = vmatprep.subr.mxu0 0.0
        %327 = vmatpush1.msra.mxu0 0.0
        %328 = vmatprep.subr.mxu0 0.0
        %329 = vmatpush1.msra.mxu0 0.0
        %330 = vmatprep.subr.mxu0 0.0
        %331 = vmatpush1.msra.mxu0 0.0
        %332 = vmatprep.subr.mxu0 0.0
        %333 = vmatpush1.msra.mxu0 0.0
        %334 = vmatprep.subr.mxu0 0.0
        %335 = vmatpush1.msra.mxu0 0.0
        %336 = vmatprep.subr.mxu0 0.0
        %337 = vmatpush1.msra.mxu0 0.0
        %338 = vmatprep.subr.mxu0 0.0
        %339 = vmatpush1.msra.mxu0 0.0
        %340 = vmatprep.subr.mxu0 0.0
        %341 = vmatpush1.msra.mxu0 0.0
        %342 = vmatprep.subr.mxu0 0.0
        %343 = vmatpush1.msra.mxu0 0.0
        %344 = vmatprep.subr.mxu0 0.0
        %345 = vmatpush1.msra.mxu0 0.0
        %346 = vmatprep.subr.mxu0 0.0
        %347 = vmatpush1.msra.mxu0 0.0
        %348 = vmatprep.subr.mxu0 0.0
        %349 = vmatpush1.msra.mxu0 0.0
        %350 = vmatprep.subr.mxu0 0.0
        %351 = vmatpush1.msra.mxu0 0.0
        %352 = vmatprep.subr.mxu0 0.0
        %353 = vmatpush1.msra.mxu0 0.0
        %354 = vmatprep.subr.mxu0 0.0
        %355 = vmatpush1.msra.mxu0 0.0
        %356 = vmatprep.subr.mxu0 0.0
        %357 = vmatpush1.msra.mxu0 0.0
        %358 = vmatprep.subr.mxu0 0.0
        %359 = vmatpush1.msra.mxu0 0.0
        %360 = vmatprep.mubr.f32.mxu0 0.0
        %361 = vmatmul.mubr.f32.gmra.mrb[0].mxu0 %v291
        %v362 = vpop.f32.mrb[0].mxu0
        %v363 = vadd.f32 0.0, %v362
        %v364 = vpop.f32.mrb[0].mxu0
        %v365 = vadd.f32 0.0, %v364
        %366 = vmatprep.mubr.f32.mxu0 0.0
        %367 = vmatmul.mubr.f32.gmra.mrb[0].mxu0 %v294
        %v368 = vpop.f32.mrb[0].mxu0
        %v369 = vadd.f32 0.0, %v368
        %v370 = vpop.f32.mrb[0].mxu0
        %v371 = vadd.f32 0.0, %v370
        %372 = vdwg.mxu0
        %v373 = vmul.f32 %v363, 2.0
        %v374 = vmul.f32 %v365, 2.0
        %v375 = vmul.f32 %v369, 2.0
        %v376 = vmul.f32 %v371, 2.0
        %v377 = vmax.f32 %v373, %v375
        %v378 = vrot.slane %v377, 4
        %v379 = vmax.f32 %v377, %v378
        %v380 = vrot.slane %v379, 2
        %v381 = vmax.f32 %v379, %v380
        %v382 = vrot.slane %v381, 1
        %v383 = vmax.f32 %v381, %v382
        %v384 = vmax.f32 %v374, %v376
        %v385 = vrot.slane %v384, 4
        %v386 = vmax.f32 %v384, %v385
        %v387 = vrot.slane %v386, 2
        %v388 = vmax.f32 %v386, %v387
        %v389 = vrot.slane %v388, 1
        %v390 = vmax.f32 %v388, %v389
        %v391 = vsub.f32 %v373, %v383
        %v392 = vsub.f32 %v374, %v390
        %v393 = vsub.f32 %v375, %v383
        %v394 = vsub.f32 %v376, %v390
        %v395 = vmul.f32 %v391, 1.442695
        %v396 = vpow.pop %v395
        %v397 = vmul.f32 %v392, 1.442695
        %v398 = vpow.pop %v397
        %v399 = vmul.f32 %v393, 1.442695
        %v400 = vpow.pop %v399
        %v401 = vmul.f32 %v394, 1.442695
        %v402 = vpow.pop %v401
        %v403 = vadd.f32 %v396, %v400
        %v404 = vrot.slane %v403, 4
        %v405 = vadd.f32 %v403, %v404
        %v406 = vrot.slane %v405, 2
        %v407 = vadd.f32 %v405, %v406
        %v408 = vrot.slane %v407, 1
        %v409 = vadd.f32 %v407, %v408
        %v410 = vadd.f32 %v398, %v402
        %v411 = vrot.slane %v410, 4
        %v412 = vadd.f32 %v410, %v411
        %v413 = vrot.slane %v412, 2
        %v414 = vadd.f32 %v412, %v413
        %v415 = vrot.slane %v414, 1
        %v416 = vadd.f32 %v414, %v415
        %v417 = vrcp.pop %v409
        %v418 = vrcp.pop %v416
        %v419 = vmul.f32 %v396, %v417
        %v420 = vmul.f32 %v398, %v418
        %v421 = vmul.f32 %v400, %v417
        %v422 = vmul.f32 %v402, %v418
        %423 = vst [vmem:[%s224] sm:$0xff] %v419
        %424 = vst [vmem:[%s224 + $0x8] sm:$0xff] %v420
        %425 = vst [vmem:[%s224 + $0x10] sm:$0xff] %v421
        %426 = vst [vmem:[%s224 + $0x18] sm:$0xff] %v422
        %v427 = vmul.f32 %v419, %v363
        %v428 = vmul.f32 %v420, %v365
        %v429 = vmul.f32 %v421, %v369
        %v430 = vmul.f32 %v422, %v371
        %v431 = vadd.f32 %v427, %v428
        %432 = vadd.xlane.f32.xlu0 %v431
        %v433 = vpop.xlane.xlu0 %432
        %v434 = vadd.f32 %v429, %v430
        %435 = vadd.xlane.f32.xlu0 %v434
        %v436 = vpop.xlane.xlu0 %435
        %v437 = vadd.f32 %v433, %v436
        %v438 = vrot.slane %v437, 4
        %v439 = vadd.f32 %v437, %v438
        %v440 = vrot.slane %v439, 2
        %v441 = vadd.f32 %v439, %v440
        %v442 = vrot.slane %v441, 1
        %v443 = vadd.f32 %v441, %v442
        %vm444 = vcmask 0
        %445 = vst.msk [vmem:[%s240] sm:$0x1] %vm444, %v443
        %s446 = sand.u32 %s93, 1
        %s447 = scalar_lea.sflag [#allocation4], %s446
        %s448 = sand.u32 %s93, 1
        %s449 = smul.addr %s448, 32
        %s450 = scalar_lea.vmem [#allocation7], %s449
        %p451 = scmp.lt.s32.totalorder %s26, 1
        %s452 = scalar_select %p451, %s26, 1
        %p453 = scmp.lt.s32.totalorder %s27, 0
        %s454 = scalar_select %p453, %s27, 0
        %s455 = sadd.s32 %s454, %s452
        %s456 = scalar_lea.vmem %s3, %s455
        // Predicated region
        $region37: #{tpu_custom_call.1} parent=27 // pred_check
          %p457 = pneg %p103
        $region38: #{tpu_custom_call.1} parent=27 // pred_check_branch
          %459 = sbr.rel (%p457) target = $region40
        $region39: #{tpu_custom_call.1} parent=27 // pred_region
          %s460 = smul.u32 2, %s27
          %s462 = ssub.s32 512, 512
          %463 = vsyncadd %s447, %s462
          %s464 = smul.addr %s26, 4
          %s465 = sadd.s32 %s460, %s464
          %s466 = smul.addr %s465, 128
          %s467 = scalar_lea.hbm %s2, %s466
          %s468 = sshll.u32 %s450, 4
          %s469 = int_to_ptr.vmem [resolvable:$true] %s468
          %474 = dma.vmem_to_hbm [thread:$0]  %s469, 512, %s467, %s447, 256, 256, 16
        $region40: #{tpu_custom_call.1} parent=27 // pred_fallthru
          _
        // Predicated region
        $region41: #{tpu_custom_call.1} parent=27 // pred_check
          %p475 = pneg %p131
        $region42: #{tpu_custom_call.1} parent=27 // pred_check_branch
          %477 = sbr.rel (%p475) target = $region44
        $region43: #{tpu_custom_call.1} parent=27 // pred_region
          _
        $region44: #{tpu_custom_call.1} parent=27 // pred_fallthru
          _
      $region28: #{tpu_custom_call.1} parent=5 // pred_fallthru
        _
      %p478 = scmp.le.s32.totalorder 2, %s17
      // Predicated region
      $region45: #{tpu_custom_call.1} parent=5 // pred_check
        %p479 = pneg %p478
      $region46: #{tpu_custom_call.1} parent=5 // pred_check_branch
        %481 = sbr.rel (%p479) target = $region48
      $region47: #{tpu_custom_call.1} parent=5 // pred_region
        %s482 = ssub.s32 %s17, 2
        // Predicated region
        $region49: #{tpu_custom_call.1} parent=47 // pred_check
          %p483 = pneg %p109
        $region50: #{tpu_custom_call.1} parent=47 // pred_check_branch
          %485 = sbr.rel (%p483) target = $region52
        $region51: #{tpu_custom_call.1} parent=47 // pred_region
          %s486 = sand.u32 %s94, 1
          %s487 = scalar_lea.sflag [#allocation4], %s486
          %s488 = sand.u32 %s94, 1
          %s489 = smul.addr %s488, 32
          %s490 = scalar_lea.vmem [#allocation7], %s489
          %491 = dma.done %s487, 512
        $region52: #{tpu_custom_call.1} parent=47 // pred_fallthru
          _
        // Predicated region
        $region53: #{tpu_custom_call.1} parent=47 // pred_check
          %p492 = pneg %p137
        $region54: #{tpu_custom_call.1} parent=47 // pred_check_branch
          %494 = sbr.rel (%p492) target = $region56
        $region55: #{tpu_custom_call.1} parent=47 // pred_region
          %p495 = scmp.lt.s32.totalorder %s28, 1
          %s496 = scalar_select %p495, %s28, 1
          %p497 = scmp.lt.s32.totalorder %s29, 0
          %s498 = scalar_select %p497, %s29, 0
          %s499 = sadd.s32 %s498, %s496
          %s500 = scalar_lea.vmem %s3, %s499
        $region56: #{tpu_custom_call.1} parent=47 // pred_fallthru
          _
      $region48: #{tpu_custom_call.1} parent=5 // pred_fallthru
        _
    $region6: #{tpu_custom_call.1} parent=1 // loop_footer
      %s21 = sadd.s32 1, %s17
    $region7: #{tpu_custom_call.1} parent=1 // loop_footer_branch
      %16 = sbr.rel target = $region3
    $region8: #{tpu_custom_call.1} parent=1 // loop_exit
      _
    %501 = vsyncpa [#allocation3], 1
    %s502 = scalar_lea.sflag [#allocation3], 1
    %503 = vsyncpa %s502, 1
    %504 = vsyncpa [#allocation6], 1
    %505 = vsyncpa [#allocation4], 1
    %s506 = scalar_lea.sflag [#allocation4], 1
    %507 = vsyncpa %s506, 1

</llo_original>
